<compile_context>
chip_gen: v7x
topology: tpu7x:2x2x1
jax: 0.10.0
libtpu: 0.0.40
codegen_flags: <defaults>
</compile_context>

<pallas_src>
import jax
import jax.numpy as jnp
from jax.experimental import pallas as pl
from jax.experimental.pallas import tpu as pltpu

_TILE_BYTES = 4 * 1024 * 1024      # per-operand tile budget (~4 MiB)
_VMEM_LIMIT = 32 * 1024 * 1024     # safe scoped-VMEM limit on v5e/v6e/v7x


def _mix_kernel(mix_ref, a_ref, b_ref, o_ref):
    # mix_ref: SMEM scalar-prefetch ref, shape (1,)
    # a_ref, b_ref, o_ref: VMEM tiles of shape (tr, L)
    mix = mix_ref[0]
    sig = jax.nn.sigmoid(mix)                    # scalar; EUP has huge slack here
    a = a_ref[...]
    b = b_ref[...]
    # b + sig*(a - b)  ==  sig*a + (1-sig)*b, one fewer wide multiply
    o_ref[...] = (b + sig * (a - b)).astype(o_ref.dtype)


def _choose_lanes(n):
    """Pick a lane-dense last dim that divides n if possible (no pad needed)."""
    for L in (512, 384, 256, 128):
        if n % L == 0:
            return L
    return 128                                   # fallback: pad tail to 128 multiple


def mix_forward(mix_param, A, B):
    """JAX wrapper reproducing Mix.forward((A, B))."""
    assert A.shape == B.shape and A.dtype == B.dtype
    orig_shape = A.shape
    n = int(A.size)
    dtype = A.dtype
    itemsize = jnp.dtype(dtype).itemsize
    sublane_mult = 8 * max(1, 4 // itemsize)     # 8 (f32) / 16 (bf16) / 32 (int8)

    # --- lane-dense reshape (free bitcast on the common path) ---------------
    L = _choose_lanes(n)
    rows = pl.cdiv(n, L)
    n_padded = rows * L

    a_flat = A.reshape(-1)
    b_flat = B.reshape(-1)
    if n_padded != n:                            # rare: pad < L elements only
        pad = n_padded - n
        a_flat = jnp.pad(a_flat, (0, pad))
        b_flat = jnp.pad(b_flat, (0, pad))
    A2 = a_flat.reshape(rows, L)
    B2 = b_flat.reshape(rows, L)

    # --- tile rows: byte budget, dtype-aware alignment, >=2 grid steps ------
    tr_budget = max(
        sublane_mult,
        (_TILE_BYTES // (L * itemsize)) // sublane_mult * sublane_mult,
    )
    if rows <= sublane_mult:
        # Tiny input: one block whose shape equals the full array dims.
        tr = rows
    else:
        half = -(-rows // 2)                                      # ceil(rows/2)
        half_aligned = -(-half // sublane_mult) * sublane_mult    # align up
        tr = min(tr_budget, half_aligned)
    grid_rows = pl.cdiv(rows, tr)                # last block may be partial

    cost = pl.CostEstimate(
        flops=2 * n_padded,
        transcendentals=int(grid_rows),
        bytes_accessed=3 * n_padded * itemsize,
    )

    out2 = pl.pallas_call(
        _mix_kernel,
        out_shape=jax.ShapeDtypeStruct((rows, L), dtype),
        grid_spec=pltpu.PrefetchScalarGridSpec(
            num_scalar_prefetch=1,
            grid=(grid_rows,),
            in_specs=[
                pl.BlockSpec((tr, L), lambda i, mix: (i, 0)),   # A tile
                pl.BlockSpec((tr, L), lambda i, mix: (i, 0)),   # B tile
            ],
            out_specs=pl.BlockSpec((tr, L), lambda i, mix: (i, 0)),
        ),
        compiler_params=pltpu.CompilerParams(
            dimension_semantics=("parallel",),   # shard rows across TCs (v7x)
            vmem_limit_bytes=_VMEM_LIMIT,
        ),
        cost_estimate=cost,
    )(mix_param, A2, B2)

    if n_padded != n:
        return out2.reshape(-1)[:n].reshape(orig_shape)
    return out2.reshape(orig_shape)              # free bitcast on common path


if __name__ == "__main__":
    key = jax.random.PRNGKey(0)
    k_mix, k_a, k_b = jax.random.split(key, 3)

    # Deterministic parameter init (PyTorch: torch.rand((1,)) ~ U[0,1))
    mix_param = jax.random.uniform(k_mix, (1,), dtype=jnp.float32)
    sig = jax.nn.sigmoid(mix_param[0])

    # Primary NCHW example (single full-array block path)
    A = jax.random.normal(k_a, (2, 4, 16, 16), dtype=jnp.float32)
    B = jax.random.normal(k_b, (2, 4, 16, 16), dtype=jnp.float32)
    out = jax.block_until_ready(mix_forward(mix_param, A, B))
    ref = sig * A + (1.0 - sig) * B
    assert out.shape == A.shape
    assert jnp.allclose(out, ref, atol=1e-6, rtol=1e-6)

    # Multi-block path (rows > sublane multiple, grid >= 2, no padding)
    A2 = jax.random.normal(k_a, (4, 8, 32, 32), dtype=jnp.float32)
    B2 = jax.random.normal(k_b, (4, 8, 32, 32), dtype=jnp.float32)
    out2 = jax.block_until_ready(mix_forward(mix_param, A2, B2))
    ref2 = sig * A2 + (1.0 - sig) * B2
    assert jnp.allclose(out2, ref2, atol=1e-6, rtol=1e-6)

    # Odd-size fallback path (pad to a multiple of 128 + partial edge block)
    A3 = jax.random.normal(k_a, (3, 5, 7, 11), dtype=jnp.float32)
    B3 = jax.random.normal(k_b, (3, 5, 7, 11), dtype=jnp.float32)
    out3 = jax.block_until_ready(mix_forward(mix_param, A3, B3))
    ref3 = sig * A3 + (1.0 - sig) * B3
    assert jnp.allclose(out3, ref3, atol=1e-6, rtol=1e-6)

    print("KERNEL_OK")
</pallas_src>

<mosaic_0001>
module attributes {stable_mosaic.version = 11 : i64} {
  func.func @_mix_kernel(%arg0: i32, %arg1: memref<1xf32, #tpu.memory_space<smem>>, %arg2: memref<4x512xf32, #tpu.memory_space<vmem>>, %arg3: memref<4x512xf32, #tpu.memory_space<vmem>>, %arg4: memref<4x512xf32, #tpu.memory_space<vmem>>) attributes {dimension_semantics = [#tpu.dimension_semantics<parallel>], iteration_bounds = array<i64: 1>, scalar_prefetch = 1 : i64, scratch_operands = 0 : i64, tpu.core_type = #tpu.core_type<tc>, window_params = [{transform_indices = @transform_0, window_bounds = array<i64: 4, 512>}, {transform_indices = @transform_1, window_bounds = array<i64: 4, 512>}, {transform_indices = @transform_2, window_bounds = array<i64: 4, 512>}]} {
    %c0 = arith.constant 0 : index
    %0 = memref.load %arg1[%c0] : memref<1xf32, #tpu.memory_space<smem>>
    %1 = arith.negf %0 : f32
    %2 = math.exp %1 : f32
    %cst = arith.constant 1.000000e+00 : f32
    %3 = arith.addf %cst, %2 : f32
    %4 = arith.divf %cst, %3 : f32
    %c0_0 = arith.constant 0 : index
    %c0_1 = arith.constant 0 : index
    %5 = vector.load %arg2[%c0_0, %c0_1] : memref<4x512xf32, #tpu.memory_space<vmem>>, vector<4x512xf32>
    %c0_2 = arith.constant 0 : index
    %c0_3 = arith.constant 0 : index
    %6 = vector.load %arg3[%c0_2, %c0_3] : memref<4x512xf32, #tpu.memory_space<vmem>>, vector<4x512xf32>
    %7 = arith.subf %5, %6 : vector<4x512xf32>
    %8 = vector.broadcast %4 : f32 to vector<4x512xf32>
    %9 = arith.mulf %8, %7 : vector<4x512xf32>
    %10 = arith.addf %6, %9 : vector<4x512xf32>
    %c0_4 = arith.constant 0 : index
    %c0_5 = arith.constant 0 : index
    %11 = vector.load %arg4[%c0_4, %c0_5] : memref<4x512xf32, #tpu.memory_space<vmem>>, vector<4x512xf32>
    tpu.vector_store %arg4[%c0_4, %c0_5], %10 {strides = array<i32>} : memref<4x512xf32, #tpu.memory_space<vmem>>, vector<4x512xf32>,
    return
  }
  func.func @transform_0(%arg0: i32, %arg1: memref<1xf32, #tpu.memory_space<smem>>) -> (i32, i32) {
    %c0_i32 = arith.constant 0 : i32
    %c0_i32_0 = arith.constant 0 : i32
    return %arg0, %c0_i32 : i32, i32
  }
  func.func @transform_1(%arg0: i32, %arg1: memref<1xf32, #tpu.memory_space<smem>>) -> (i32, i32) {
    %c0_i32 = arith.constant 0 : i32
    %c0_i32_0 = arith.constant 0 : i32
    return %arg0, %c0_i32 : i32, i32
  }
  func.func @transform_2(%arg0: i32, %arg1: memref<1xf32, #tpu.memory_space<smem>>) -> (i32, i32) {
    %c0_i32 = arith.constant 0 : i32
    %c0_i32_0 = arith.constant 0 : i32
    return %arg0, %c0_i32 : i32, i32
  }
}

</mosaic_0001>

<llo_original>
// kernel: tpu_custom_call.1
$region0: #{tpu_custom_call.1}
  #allocation0 [shape = 'u32[]', space=smem, size = 0x4, offset = 0x4, fixed_abs, tag = 'smem constant byte address 0x4 - core index']
  #allocation1 [shape = 'u32[144,128]{1,0:T(1,128)}', space=vmem, size = 0x12000, scoped, tag = 'internal scratch']
  #allocation2 [shape = 's32[1]{0}', space=sflag, size = 0x4, scoped, tag = 'scoped memory for tpu_custom_call.1']
  #allocation3 [shape = 'f32[1]{0:T(128)S(6)}', space=smem, size = 0x200, scoped, tag = 'prefetched SMEM operand 0']
  %s0 = inlined_call_operand.<no memory space> [shape: f32[1], index: 0, kind: input, shape index: {}]
  %s1 = inlined_call_operand.hbm [shape: f32[4,512], index: 1, kind: input, shape index: {}]
  %s2 = inlined_call_operand.hbm [shape: f32[4,512], index: 2, kind: input, shape index: {}]
  %s3 = inlined_call_operand.hbm [shape: f32[4,512], index: 3, kind: output, shape index: {}]
  %s4 = sld [smem:[#allocation0]]
  $region26: #{tpu_custom_call.1} parent=0
    _
  %s6 = ssub.s32 1, %s4
  %s7 = scalar_select 0, %s6, %s4
  %8 = sst [smem:[#allocation3]] %s0
  $region1: #{tpu_custom_call.1} parent=0
    #allocation4 [shape = 'u8[8192]{0}', space=vmem, size = 0x2000, scoped, tag = 'input window, operand 1, single buffered']
    #allocation5 [shape = 's32[1]{0}', space=sflag, size = 0x4, scoped, tag = 'scoped memory for tpu_custom_call.1']
    #allocation6 [shape = 's32[1]{0}', space=sflag, size = 0x4, scoped, tag = 'scoped memory for tpu_custom_call.1']
    #allocation7 [shape = 'u8[8192]{0}', space=vmem, size = 0x2000, scoped, tag = 'input window, operand 2, single buffered']
    #allocation8 [shape = 's32[1]{0}', space=sflag, size = 0x4, scoped, tag = 'scoped memory for tpu_custom_call.1']
    #allocation9 [shape = 'u8[8192]{0}', space=vmem, size = 0x2000, scoped, tag = 'output window, operand 0, single buffered']
    %9 = vsyncpa [#allocation5], 0
    %10 = vsyncpa [#allocation8], 0
    %11 = vsyncpa [#allocation6], 0
    // Predicated region
    $region2: #{tpu_custom_call.1} parent=1 // pred_check
      _
    $region3: #{tpu_custom_call.1} parent=1 // pred_check_branch
      %13 = sbr.rel (0) target = $region5
    $region4: #{tpu_custom_call.1} parent=1 // pred_region
      %s15 = ssub.s32 256, 256
      %16 = vsyncadd [#allocation5], %s15
      %s18 = sshll.u32 [#allocation4], 4
      %s19 = int_to_ptr.vmem [resolvable:$true] %s18
      %21 = dma.hbm_to_vmem [thread:$0]  %s1, 256, %s19, [#allocation5]
    $region5: #{tpu_custom_call.1} parent=1 // pred_fallthru
      _
    // Predicated region
    $region6: #{tpu_custom_call.1} parent=1 // pred_check
      _
    $region7: #{tpu_custom_call.1} parent=1 // pred_check_branch
      %23 = sbr.rel (0) target = $region9
    $region8: #{tpu_custom_call.1} parent=1 // pred_region
      %s25 = ssub.s32 256, 256
      %26 = vsyncadd [#allocation8], %s25
      %s28 = sshll.u32 [#allocation7], 4
      %s29 = int_to_ptr.vmem [resolvable:$true] %s28
      %31 = dma.hbm_to_vmem [thread:$0]  %s2, 256, %s29, [#allocation8]
    $region9: #{tpu_custom_call.1} parent=1 // pred_fallthru
      _
    // Predicated region
    $region10: #{tpu_custom_call.1} parent=1 // pred_check
      _
    $region11: #{tpu_custom_call.1} parent=1 // pred_check_branch
      %33 = sbr.rel (0) target = $region13
    $region12: #{tpu_custom_call.1} parent=1 // pred_region
      %34 = dma.done [#allocation5], 256
    $region13: #{tpu_custom_call.1} parent=1 // pred_fallthru
      _
    // Predicated region
    $region14: #{tpu_custom_call.1} parent=1 // pred_check
      _
    $region15: #{tpu_custom_call.1} parent=1 // pred_check_branch
      %36 = sbr.rel (0) target = $region17
    $region16: #{tpu_custom_call.1} parent=1 // pred_region
      %37 = dma.done [#allocation8], 256
    $region17: #{tpu_custom_call.1} parent=1 // pred_fallthru
      _
    %s38 = sld [smem:[#allocation3]]
    %s39 = sxor.u32 %s38, 2147483648
    %v40 = vstv %s39
    %v41 = vmul.f32 %v40, 1.442695
    %v42 = vpow.pop %v41
    %s43 = vtos %v42
    %s44 = sadd.f32 %s43, 1.0
    %v45 = vstv %s44
    %v46 = vrcp.pop %v45
    %s47 = vtos %v46
    %v48 = vld [vmem:[#allocation4] sm:$0xff]
    %v49 = vld [vmem:[#allocation4 + $0x8] sm:$0xff]
    %v50 = vld [vmem:[#allocation7] sm:$0xff]
    %v51 = vld [vmem:[#allocation7 + $0x8] sm:$0xff]
    %v52 = vsub.f32 %v48, %v50
    %v53 = vsub.f32 %v49, %v51
    %v54 = vstv %s47
    %v55 = vmul.f32 %v54, %v52
    %v56 = vmul.f32 %v54, %v53
    %v57 = vadd.f32 %v50, %v55
    %v58 = vadd.f32 %v51, %v56
    %59 = vst [vmem:[#allocation9] sm:$0xff] %v57
    %60 = vst [vmem:[#allocation9 + $0x8] sm:$0xff] %v58
    // Predicated region
    $region18: #{tpu_custom_call.1} parent=1 // pred_check
      _
    $region19: #{tpu_custom_call.1} parent=1 // pred_check_branch
      %62 = sbr.rel (0) target = $region21
    $region20: #{tpu_custom_call.1} parent=1 // pred_region
      %s64 = ssub.s32 256, 256
      %65 = vsyncadd [#allocation6], %s64
      %s67 = sshll.u32 [#allocation9], 4
      %s68 = int_to_ptr.vmem [resolvable:$true] %s67
      %70 = dma.vmem_to_hbm [thread:$0]  %s68, 256, %s3, [#allocation6]
    $region21: #{tpu_custom_call.1} parent=1 // pred_fallthru
      _
    // Predicated region
    $region22: #{tpu_custom_call.1} parent=1 // pred_check
      _
    $region23: #{tpu_custom_call.1} parent=1 // pred_check_branch
      %72 = sbr.rel (0) target = $region25
    $region24: #{tpu_custom_call.1} parent=1 // pred_region
      %73 = dma.done [#allocation6], 256
    $region25: #{tpu_custom_call.1} parent=1 // pred_fallthru
      _
    %74 = vsyncpa [#allocation5], 1
    %75 = vsyncpa [#allocation8], 1
    %76 = vsyncpa [#allocation6], 1

</llo_original>
